<compile_context>
chip_gen: v6e
topology: v6e:2x2x1
jax: 0.10.0
libtpu: 0.0.40
codegen_flags: <defaults>
</compile_context>

<pallas_src>
import functools

import numpy as np
import jax
import jax.numpy as jnp
from jax.experimental import pallas as pl
from jax.experimental.pallas import tpu as pltpu


def _round_up(x, m):
    return (x + m - 1) // m * m


def _layernorm(y, gamma, beta, eps=1e-5):
    mu = jnp.mean(y, axis=-1, keepdims=True)
    var = jnp.mean((y - mu) ** 2, axis=-1, keepdims=True)
    return (y - mu) * jax.lax.rsqrt(var + eps) * gamma + beta


def _build_attention_maps(H, d_k, d_v):
    """Constant 0/1 (and 1/sqrt(d_k)) matrices expressing the per-token
    attention-over-heads purely as matmuls (MXU) instead of per-head-pair
    loops.  Slot g = i*H + j indexes the (query-head i, key-head j) pair."""
    scale = 1.0 / np.sqrt(np.float32(d_k))
    EQ = np.zeros((H * d_k, H * H * d_k), np.float32)   # q_i -> slot (i,j), *scale
    EK = np.zeros((H * d_k, H * H * d_k), np.float32)   # k_j -> slot (i,j)
    EV = np.zeros((H * d_v, H * H * d_v), np.float32)   # v_j -> slot (i,j)
    SEGK = np.zeros((H * H * d_k, H * H), np.float32)   # sum over d within slot (i,j)
    SUMJ = np.zeros((H * H, H * H), np.float32)         # sum over j within row i
    EP = np.zeros((H * H, H * H * d_v), np.float32)     # p[(i,j)] -> d_v lanes of slot
    R = np.zeros((H * H * d_v, H * d_v), np.float32)    # sum over j -> output head i
    for i in range(H):
        for j in range(H):
            g = i * H + j
            for d in range(d_k):
                EQ[i * d_k + d, g * d_k + d] = scale
                EK[j * d_k + d, g * d_k + d] = 1.0
                SEGK[g * d_k + d, g] = 1.0
            for jp in range(H):
                SUMJ[i * H + jp, g] = 1.0
            for d in range(d_v):
                EV[j * d_v + d, g * d_v + d] = 1.0
                EP[g, g * d_v + d] = 1.0
                R[g * d_v + d, i * d_v + d] = 1.0
    return EQ, EK, EV, SEGK, SUMJ, EP, R


def block_kernel(x_ref,
                 wqkv_ref, segk_ref, sumj_ref, ep_ref, rwo_ref,
                 w1_ref, w2_ref, pvec_ref,
                 o_ref, *, num_heads, d_k, d_v, compute_dtype, offsets):
    H = num_heads
    nqk = H * H * d_k
    nv = H * H * d_v
    cd = compute_dtype

    def p_(name):
        off, w = offsets[name]                    # static -> zero-cost ref slice
        return pvec_ref[:, off:off + w]

    x = x_ref[...]                                # (TM, d_model) f32
    xc = x.astype(cd)

    # ---- Fused, pre-expanded Q/K/V projection: one MXU matmul ----
    qkv = jnp.dot(xc, wqkv_ref[...],
                  preferred_element_type=jnp.float32) + p_("bqkv")
    qr = qkv[:, :nqk]                    # q_i/sqrt(d_k) broadcast over j (TM, H*H*d_k)
    kr = qkv[:, nqk:2 * nqk]             # k_j broadcast over i           (TM, H*H*d_k)
    vt = qkv[:, 2 * nqk:2 * nqk + nv]    # v_j broadcast over i           (TM, H*H*d_v)

    # scores[t, i*H+j] = <q_i, k_j>/sqrt(d_k): multiply + segment-sum matmul.
    s = jnp.dot((qr * kr).astype(cd), segk_ref[...],
                preferred_element_type=jnp.float32)
    # Row max is constant within each key-head softmax group -> exact shift.
    s = s - jnp.max(s, axis=-1, keepdims=True)
    e = jnp.exp(s)
    denom = jnp.dot(e.astype(cd), sumj_ref[...],
                    preferred_element_type=jnp.float32)
    p = e * pl.reciprocal(denom, approx=True)     # softmax over key-heads j (f32)

    # y_i = sum_j p[i,j] * v_j, with the j-summation (R) folded into Wo:
    # expand p over d_v lanes (matmul), elementwise multiply with v, then one
    # matmul straight into the output projection.
    pe = jnp.dot(p.astype(cd), ep_ref[...], preferred_element_type=jnp.float32)
    y = jnp.dot((pe * vt).astype(cd), rwo_ref[...],
                preferred_element_type=jnp.float32) + p_("bo")

    # ---- LayerNorm + attention residual ----
    y = _layernorm(y, p_("ag"), p_("ab"))
    y = x + y

    # ---- Feed-forward + LayerNorm + outer residual (with ORIGINAL x) ----
    h = jnp.dot(y.astype(cd), w1_ref[...],
                preferred_element_type=jnp.float32) + p_("b1")
    h = jnp.maximum(h, 0.0)
    z = jnp.dot(h.astype(cd), w2_ref[...],
                preferred_element_type=jnp.float32) + p_("b2")
    z = _layernorm(z, p_("fg"), p_("fb"))
    o_ref[...] = x + z


def prepare_inputs(params, *, num_heads, d_k, d_v, compute_dtype):
    """Fold head expansion / scale / R into constant weights, pack all tiny
    bias & LayerNorm vectors into one 128-lane-aligned f32 array."""
    H = num_heads
    EQ, EK, EV, SEGK, SUMJ, EP, R = _build_attention_maps(H, d_k, d_v)
    EQ, EK, EV = jnp.asarray(EQ), jnp.asarray(EK), jnp.asarray(EV)

    w_qkvr = jnp.concatenate(
        [params["wq"] @ EQ, params["wk"] @ EK, params["wv"] @ EV], axis=1)
    b_qkvr = jnp.concatenate(
        [params["bq"] @ EQ, params["bk"] @ EK, params["bv"] @ EV], axis=1)
    rwo = jnp.asarray(R) @ params["wo"]          # (H*H*d_v, d_model): R folded into Wo

    # --- pack biases / LN params, each segment 128-lane aligned ---
    segs = [
        ("bqkv", b_qkvr),
        ("bo", params["bo"]),
        ("ag", params["attn_ln_g"]), ("ab", params["attn_ln_b"]),
        ("b1", params["b1"]), ("b2", params["b2"]),
        ("fg", params["ffn_ln_g"]), ("fb", params["ffn_ln_b"]),
    ]
    offsets, chunks, pos = {}, [], 0
    for name, arr in segs:
        arr = jnp.asarray(arr, jnp.float32).reshape(1, -1)
        w = arr.shape[1]
        offsets[name] = (pos, w)
        pad = _round_up(w, 128) - w
        chunks.append(arr if pad == 0 else jnp.pad(arr, ((0, 0), (0, pad))))
        pos += w + pad
    pvec = jnp.concatenate(chunks, axis=1)       # (1, pos) f32

    cd = compute_dtype                            # bf16 constants are exact (0/1)
    weights = [
        w_qkvr.astype(cd),
        jnp.asarray(SEGK).astype(cd), jnp.asarray(SUMJ).astype(cd),
        jnp.asarray(EP).astype(cd), rwo.astype(cd),
        params["w1"].astype(cd), params["w2"].astype(cd),
        pvec,
    ]
    return weights, offsets


def block_forward(x, params, *, num_heads, d_k, d_v, tm=2048,
                  compute_dtype=jnp.float32):
    B, T, d_model = x.shape
    N = B * T
    H = num_heads
    d_diff = params["w1"].shape[1]

    # Token tile: large (multiple of 8) to amortize per-grid-step overhead,
    # clamped to round_up(N, 8) so small inputs don't pad.  tm=2048 keeps
    # intermediates well under v7x's 64 MiB VMEM; sweep 4096-8192 on v5e/v6e.
    # For v7x megacore, pick tm so Np // tm >= 2 (even) when N is large.
    tm = max(8, min(_round_up(tm, 8), _round_up(N, 8)))
    Np = _round_up(N, tm)

    xf = x.reshape(N, d_model).astype(jnp.float32)
    if Np != N:
        xf = jnp.pad(xf, ((0, Np - N), (0, 0)))   # zero rows; sliced off below

    weights, offsets = prepare_inputs(params, num_heads=H, d_k=d_k, d_v=d_v,
                                      compute_dtype=compute_dtype)

    def full_spec(arr):
        nd = arr.ndim
        return pl.BlockSpec(arr.shape, lambda i, _nd=nd: (0,) * _nd)

    in_specs = [pl.BlockSpec((tm, d_model), lambda i: (i, 0))]
    in_specs += [full_spec(w) for w in weights]
    # NOTE: d_model=32 toy output stores are lane-masked; real configs with
    # d_model % 128 == 0 get dense lane-wide stores.
    out_spec = pl.BlockSpec((tm, d_model), lambda i: (i, 0))

    kernel = functools.partial(block_kernel, num_heads=H, d_k=d_k, d_v=d_v,
                               compute_dtype=compute_dtype, offsets=offsets)

    # Advisory cost estimate so XLA schedules surrounding ops sensibly.
    wqkv_cols = 2 * H * H * d_k + H * H * d_v
    flops = 2 * Np * (
        d_model * wqkv_cols
        + (H * H * d_k) * (H * H) + (H * H) * (H * H)
        + (H * H) * (H * H * d_v) + (H * H * d_v) * d_model
        + 2 * d_model * d_diff)
    transcendentals = Np * (H * H + 3)
    bytes_accessed = int(
        Np * d_model * 4 * 2
        + sum(int(w.size) * w.dtype.itemsize for w in weights))

    out = pl.pallas_call(
        kernel,
        out_shape=jax.ShapeDtypeStruct((Np, d_model), jnp.float32),
        grid_spec=pltpu.PrefetchScalarGridSpec(
            num_scalar_prefetch=0,
            grid=(Np // tm,),
            in_specs=in_specs,
            out_specs=out_spec,
        ),
        compiler_params=pltpu.CompilerParams(
            dimension_semantics=("parallel",),
            # Generous ceiling for large token tiles; actual use at tm=2048 /
            # d_model=32 is a few MiB.  Kept below v7x's 64 MiB physical VMEM.
            vmem_limit_bytes=48 * 1024 * 1024,
        ),
        cost_estimate=pl.CostEstimate(
            flops=flops,
            transcendentals=transcendentals,
            bytes_accessed=bytes_accessed),
    )(xf, *weights)
    return out[:N].reshape(B, T, d_model)


def block_reference(x, params, *, num_heads, d_k, d_v):
    """Pure-JAX f32 reference matching the PyTorch forward exactly."""
    B, T, d_model = x.shape
    xf = x.reshape(B * T, d_model)

    q = (xf @ params["wq"] + params["bq"]).reshape(-1, num_heads, d_k)
    k = (xf @ params["wk"] + params["bk"]).reshape(-1, num_heads, d_k)
    v = (xf @ params["wv"] + params["bv"]).reshape(-1, num_heads, d_v)
    s = jnp.einsum("tid,tjd->tij", q, k) / jnp.sqrt(jnp.float32(d_k))
    p = jax.nn.softmax(s, axis=-1)
    y = jnp.einsum("tij,tjd->tid", p, v).reshape(B * T, num_heads * d_v)
    y = y @ params["wo"] + params["bo"]
    y = _layernorm(y, params["attn_ln_g"], params["attn_ln_b"])
    y = xf + y

    h = jnp.maximum(y @ params["w1"] + params["b1"], 0.0)
    z = h @ params["w2"] + params["b2"]
    z = _layernorm(z, params["ffn_ln_g"], params["ffn_ln_b"])
    return (xf + z).reshape(B, T, d_model)


def init_params(key, d_k, d_v, d_model, num_heads, d_diff):
    ks = jax.random.split(key, 8)
    f32 = jnp.float32

    def lin(kk, fan_in, fan_out):
        w = 0.02 * jax.random.normal(kk, (fan_in, fan_out), dtype=f32)
        b = jnp.zeros((1, fan_out), dtype=f32)
        return w, b

    wq, bq = lin(ks[0], d_model, num_heads * d_k)
    wk, bk = lin(ks[1], d_model, num_heads * d_k)
    wv, bv = lin(ks[2], d_model, num_heads * d_v)
    wo, bo = lin(ks[3], num_heads * d_v, d_model)
    w1, b1 = lin(ks[4], d_model, d_diff)
    w2, b2 = lin(ks[5], d_diff, d_model)
    return {
        "wq": wq, "bq": bq, "wk": wk, "bk": bk, "wv": wv, "bv": bv,
        "wo": wo, "bo": bo,
        "attn_ln_g": jnp.ones((1, d_model), f32),
        "attn_ln_b": jnp.zeros((1, d_model), f32),
        "w1": w1, "b1": b1, "w2": w2, "b2": b2,
        "ffn_ln_g": jnp.ones((1, d_model), f32),
        "ffn_ln_b": jnp.zeros((1, d_model), f32),
    }


if __name__ == "__main__":
    d_k, d_v, d_model, num_heads, d_diff = 8, 8, 32, 4, 64

    key = jax.random.PRNGKey(0)
    kx, kp, kx2, kx3 = jax.random.split(key, 4)
    params = init_params(kp, d_k, d_v, d_model, num_heads, d_diff)

    # --- Case 1: small shape (single token tile), f32 MXU operands ---
    B, T = 2, 8
    x = jax.random.normal(kx, (B, T, d_model), dtype=jnp.float32)
    ref = block_reference(x, params, num_heads=num_heads, d_k=d_k, d_v=d_v)

    out_f32 = jax.block_until_ready(
        block_forward(x, params, num_heads=num_heads, d_k=d_k, d_v=d_v,
                      compute_dtype=jnp.float32))
    assert out_f32.shape == (B, T, d_model)
    assert jnp.allclose(out_f32, ref, atol=1e-2, rtol=1e-2), \
        "f32 kernel mismatch vs reference"

    # --- bf16 MXU operands (incl. constant attention matmuls); LN/softmax f32 ---
    out_bf16 = jax.block_until_ready(
        block_forward(x, params, num_heads=num_heads, d_k=d_k, d_v=d_v,
                      compute_dtype=jnp.bfloat16))
    rel_err = float(jnp.max(jnp.abs(out_bf16 - ref)) /
                    (jnp.max(jnp.abs(ref)) + 1e-6))
    assert rel_err < 5e-2, f"bf16 kernel mismatch (rel err {rel_err:.3e})"

    # --- Case 2: multi-tile grid with row padding (N=400 -> tm=256, grid=2) ---
    B2, T2 = 4, 100
    x2 = jax.random.normal(kx2, (B2, T2, d_model), dtype=jnp.float32)
    ref2 = block_reference(x2, params, num_heads=num_heads, d_k=d_k, d_v=d_v)
    out2 = jax.block_until_ready(
        block_forward(x2, params, num_heads=num_heads, d_k=d_k, d_v=d_v,
                      tm=256, compute_dtype=jnp.float32))
    assert out2.shape == (B2, T2, d_model)
    assert jnp.allclose(out2, ref2, atol=1e-2, rtol=1e-2), \
        "multi-tile kernel mismatch vs reference"

    # --- Case 3: large-tile default path (N=4096 -> tm=2048, grid=2, no pad) ---
    B3, T3 = 8, 512
    x3 = jax.random.normal(kx3, (B3, T3, d_model), dtype=jnp.float32)
    ref3 = block_reference(x3, params, num_heads=num_heads, d_k=d_k, d_v=d_v)
    out3 = jax.block_until_ready(
        block_forward(x3, params, num_heads=num_heads, d_k=d_k, d_v=d_v,
                      compute_dtype=jnp.float32))
    assert out3.shape == (B3, T3, d_model)
    assert jnp.allclose(out3, ref3, atol=1e-2, rtol=1e-2), \
        "large-tile kernel mismatch vs reference"

    print("KERNEL_OK")
</pallas_src>

<mosaic_0001>
module attributes {stable_mosaic.version = 11 : i64} {
  func.func @block_kernel(%arg0: i32, %arg1: memref<16x32xf32, #tpu.memory_space<vmem>>, %arg2: memref<32x384xf32, #tpu.memory_space<vmem>>, %arg3: memref<128x16xf32, #tpu.memory_space<vmem>>, %arg4: memref<16x16xf32, #tpu.memory_space<vmem>>, %arg5: memref<16x128xf32, #tpu.memory_space<vmem>>, %arg6: memref<128x32xf32, #tpu.memory_space<vmem>>, %arg7: memref<32x64xf32, #tpu.memory_space<vmem>>, %arg8: memref<64x32xf32, #tpu.memory_space<vmem>>, %arg9: memref<1x1280xf32, #tpu.memory_space<vmem>>, %arg10: memref<16x32xf32, #tpu.memory_space<vmem>>) attributes {dimension_semantics = [#tpu.dimension_semantics<parallel>], iteration_bounds = array<i64: 1>, scalar_prefetch = 0 : i64, scratch_operands = 0 : i64, tpu.core_type = #tpu.core_type<tc>, window_params = [{transform_indices = @transform_0, window_bounds = array<i64: 16, 32>}, {pipeline_mode = #tpu.pipeline_mode<synchronous>, transform_indices = @transform_1, window_bounds = array<i64: 32, 384>}, {pipeline_mode = #tpu.pipeline_mode<synchronous>, transform_indices = @transform_2, window_bounds = array<i64: 128, 16>}, {pipeline_mode = #tpu.pipeline_mode<synchronous>, transform_indices = @transform_3, window_bounds = array<i64: 16, 16>}, {pipeline_mode = #tpu.pipeline_mode<synchronous>, transform_indices = @transform_4, window_bounds = array<i64: 16, 128>}, {pipeline_mode = #tpu.pipeline_mode<synchronous>, transform_indices = @transform_5, window_bounds = array<i64: 128, 32>}, {pipeline_mode = #tpu.pipeline_mode<synchronous>, transform_indices = @transform_6, window_bounds = array<i64: 32, 64>}, {pipeline_mode = #tpu.pipeline_mode<synchronous>, transform_indices = @transform_7, window_bounds = array<i64: 64, 32>}, {pipeline_mode = #tpu.pipeline_mode<synchronous>, transform_indices = @transform_8, window_bounds = array<i64: 1, 1280>}, {transform_indices = @transform_9, window_bounds = array<i64: 16, 32>}]} {
    %c0 = arith.constant 0 : index
    %c0_0 = arith.constant 0 : index
    %0 = vector.load %arg1[%c0, %c0_0] : memref<16x32xf32, #tpu.memory_space<vmem>>, vector<16x32xf32>
    %c0_1 = arith.constant 0 : index
    %c0_2 = arith.constant 0 : index
    %1 = vector.load %arg2[%c0_1, %c0_2] : memref<32x384xf32, #tpu.memory_space<vmem>>, vector<32x384xf32>
    %cst = arith.constant dense<0.000000e+00> : vector<16x384xf32>
    %2 = tpu.matmul %0, %1, %cst {dimension_numbers = #tpu.dot_dimension_numbers<[1], [0], [0], [1], [0, 0, 1, 1], [], []>} : vector<16x32xf32>, vector<32x384xf32>, vector<16x384xf32> -> vector<16x384xf32>
    %c0_3 = arith.constant 0 : index
    %c0_4 = arith.constant 0 : index
    %3 = vector.load %arg9[%c0_3, %c0_4] : memref<1x1280xf32, #tpu.memory_space<vmem>>, vector<1x384xf32>
    %4 = vector.broadcast %3 : vector<1x384xf32> to vector<16x384xf32>
    %5 = arith.addf %2, %4 : vector<16x384xf32>
    %6 = vector.extract_strided_slice %5 {offsets = [0, 0], sizes = [16, 128], strides = [1, 1]} : vector<16x384xf32> to vector<16x128xf32>
    %7 = vector.extract_strided_slice %5 {offsets = [0, 128], sizes = [16, 128], strides = [1, 1]} : vector<16x384xf32> to vector<16x128xf32>
    %8 = vector.extract_strided_slice %5 {offsets = [0, 256], sizes = [16, 128], strides = [1, 1]} : vector<16x384xf32> to vector<16x128xf32>
    %9 = arith.mulf %6, %7 : vector<16x128xf32>
    %c0_5 = arith.constant 0 : index
    %c0_6 = arith.constant 0 : index
    %10 = vector.load %arg3[%c0_5, %c0_6] : memref<128x16xf32, #tpu.memory_space<vmem>>, vector<128x16xf32>
    %cst_7 = arith.constant dense<0.000000e+00> : vector<16x16xf32>
    %11 = tpu.matmul %9, %10, %cst_7 {dimension_numbers = #tpu.dot_dimension_numbers<[1], [0], [0], [1], [0, 0, 1, 1], [], []>} : vector<16x128xf32>, vector<128x16xf32>, vector<16x16xf32> -> vector<16x16xf32>
    %cst_8 = arith.constant dense<0xFF800000> : vector<16xf32>
    %12 = vector.multi_reduction <maximumf>, %11, %cst_8 [1] : vector<16x16xf32> to vector<16xf32>
    %13 = vector.shape_cast %12 : vector<16xf32> to vector<16x1xf32>
    %14 = vector.broadcast %13 : vector<16x1xf32> to vector<16x16xf32>
    %15 = arith.subf %11, %14 : vector<16x16xf32>
    %16 = math.exp %15 : vector<16x16xf32>
    %c0_9 = arith.constant 0 : index
    %c0_10 = arith.constant 0 : index
    %17 = vector.load %arg4[%c0_9, %c0_10] : memref<16x16xf32, #tpu.memory_space<vmem>>, vector<16x16xf32>
    %cst_11 = arith.constant dense<0.000000e+00> : vector<16x16xf32>
    %18 = tpu.matmul %16, %17, %cst_11 {dimension_numbers = #tpu.dot_dimension_numbers<[1], [0], [0], [1], [0, 0, 1, 1], [], []>} : vector<16x16xf32>, vector<16x16xf32>, vector<16x16xf32> -> vector<16x16xf32>
    %19 = tpu.reciprocal %18 {approx = true} : vector<16x16xf32> -> vector<16x16xf32>
    %20 = arith.mulf %16, %19 : vector<16x16xf32>
    %c0_12 = arith.constant 0 : index
    %c0_13 = arith.constant 0 : index
    %21 = vector.load %arg5[%c0_12, %c0_13] : memref<16x128xf32, #tpu.memory_space<vmem>>, vector<16x128xf32>
    %cst_14 = arith.constant dense<0.000000e+00> : vector<16x128xf32>
    %22 = tpu.matmul %20, %21, %cst_14 {dimension_numbers = #tpu.dot_dimension_numbers<[1], [0], [0], [1], [0, 0, 1, 1], [], []>} : vector<16x16xf32>, vector<16x128xf32>, vector<16x128xf32> -> vector<16x128xf32>
    %23 = arith.mulf %22, %8 : vector<16x128xf32>
    %c0_15 = arith.constant 0 : index
    %c0_16 = arith.constant 0 : index
    %24 = vector.load %arg6[%c0_15, %c0_16] : memref<128x32xf32, #tpu.memory_space<vmem>>, vector<128x32xf32>
    %cst_17 = arith.constant dense<0.000000e+00> : vector<16x32xf32>
    %25 = tpu.matmul %23, %24, %cst_17 {dimension_numbers = #tpu.dot_dimension_numbers<[1], [0], [0], [1], [0, 0, 1, 1], [], []>} : vector<16x128xf32>, vector<128x32xf32>, vector<16x32xf32> -> vector<16x32xf32>
    %c0_18 = arith.constant 0 : index
    %c384 = arith.constant 384 : index
    %26 = vector.load %arg9[%c0_18, %c384] : memref<1x1280xf32, #tpu.memory_space<vmem>>, vector<1x32xf32>
    %27 = vector.broadcast %26 : vector<1x32xf32> to vector<16x32xf32>
    %28 = arith.addf %25, %27 : vector<16x32xf32>
    %c0_19 = arith.constant 0 : index
    %c512 = arith.constant 512 : index
    %29 = vector.load %arg9[%c0_19, %c512] : memref<1x1280xf32, #tpu.memory_space<vmem>>, vector<1x32xf32>
    %c0_20 = arith.constant 0 : index
    %c640 = arith.constant 640 : index
    %30 = vector.load %arg9[%c0_20, %c640] : memref<1x1280xf32, #tpu.memory_space<vmem>>, vector<1x32xf32>
    %cst_21 = arith.constant dense<0.000000e+00> : vector<16xf32>
    %31 = vector.multi_reduction <add>, %28, %cst_21 [1] : vector<16x32xf32> to vector<16xf32>
    %32 = vector.shape_cast %31 : vector<16xf32> to vector<16x1xf32>
    %cst_22 = arith.constant 3.200000e+01 : f32
    %33 = vector.broadcast %cst_22 : f32 to vector<16x1xf32>
    %34 = arith.divf %32, %33 : vector<16x1xf32>
    %35 = vector.broadcast %34 : vector<16x1xf32> to vector<16x32xf32>
    %36 = arith.subf %28, %35 : vector<16x32xf32>
    %37 = arith.mulf %36, %36 : vector<16x32xf32>
    %cst_23 = arith.constant dense<0.000000e+00> : vector<16xf32>
    %38 = vector.multi_reduction <add>, %37, %cst_23 [1] : vector<16x32xf32> to vector<16xf32>
    %39 = vector.shape_cast %38 : vector<16xf32> to vector<16x1xf32>
    %cst_24 = arith.constant 3.200000e+01 : f32
    %40 = vector.broadcast %cst_24 : f32 to vector<16x1xf32>
    %41 = arith.divf %39, %40 : vector<16x1xf32>
    %42 = vector.broadcast %34 : vector<16x1xf32> to vector<16x32xf32>
    %43 = arith.subf %28, %42 : vector<16x32xf32>
    %cst_25 = arith.constant 9.99999974E-6 : f32
    %44 = vector.broadcast %cst_25 : f32 to vector<16x1xf32>
    %45 = arith.addf %41, %44 : vector<16x1xf32>
    %46 = math.rsqrt %45 : vector<16x1xf32>
    %47 = vector.broadcast %46 : vector<16x1xf32> to vector<16x32xf32>
    %48 = arith.mulf %43, %47 : vector<16x32xf32>
    %49 = vector.broadcast %29 : vector<1x32xf32> to vector<16x32xf32>
    %50 = arith.mulf %48, %49 : vector<16x32xf32>
    %51 = vector.broadcast %30 : vector<1x32xf32> to vector<16x32xf32>
    %52 = arith.addf %50, %51 : vector<16x32xf32>
    %53 = arith.addf %0, %52 : vector<16x32xf32>
    %c0_26 = arith.constant 0 : index
    %c0_27 = arith.constant 0 : index
    %54 = vector.load %arg7[%c0_26, %c0_27] : memref<32x64xf32, #tpu.memory_space<vmem>>, vector<32x64xf32>
    %cst_28 = arith.constant dense<0.000000e+00> : vector<16x64xf32>
    %55 = tpu.matmul %53, %54, %cst_28 {dimension_numbers = #tpu.dot_dimension_numbers<[1], [0], [0], [1], [0, 0, 1, 1], [], []>} : vector<16x32xf32>, vector<32x64xf32>, vector<16x64xf32> -> vector<16x64xf32>
    %c0_29 = arith.constant 0 : index
    %c768 = arith.constant 768 : index
    %56 = vector.load %arg9[%c0_29, %c768] : memref<1x1280xf32, #tpu.memory_space<vmem>>, vector<1x64xf32>
    %57 = vector.broadcast %56 : vector<1x64xf32> to vector<16x64xf32>
    %58 = arith.addf %55, %57 : vector<16x64xf32>
    %cst_30 = arith.constant 0.000000e+00 : f32
    %59 = vector.broadcast %cst_30 : f32 to vector<16x64xf32>
    %60 = arith.maximumf %58, %59 : vector<16x64xf32>
    %c0_31 = arith.constant 0 : index
    %c0_32 = arith.constant 0 : index
    %61 = vector.load %arg8[%c0_31, %c0_32] : memref<64x32xf32, #tpu.memory_space<vmem>>, vector<64x32xf32>
    %cst_33 = arith.constant dense<0.000000e+00> : vector<16x32xf32>
    %62 = tpu.matmul %60, %61, %cst_33 {dimension_numbers = #tpu.dot_dimension_numbers<[1], [0], [0], [1], [0, 0, 1, 1], [], []>} : vector<16x64xf32>, vector<64x32xf32>, vector<16x32xf32> -> vector<16x32xf32>
    %c0_34 = arith.constant 0 : index
    %c896 = arith.constant 896 : index
    %63 = vector.load %arg9[%c0_34, %c896] : memref<1x1280xf32, #tpu.memory_space<vmem>>, vector<1x32xf32>
    %64 = vector.broadcast %63 : vector<1x32xf32> to vector<16x32xf32>
    %65 = arith.addf %62, %64 : vector<16x32xf32>
    %c0_35 = arith.constant 0 : index
    %c1024 = arith.constant 1024 : index
    %66 = vector.load %arg9[%c0_35, %c1024] : memref<1x1280xf32, #tpu.memory_space<vmem>>, vector<1x32xf32>
    %c0_36 = arith.constant 0 : index
    %c1152 = arith.constant 1152 : index
    %67 = vector.load %arg9[%c0_36, %c1152] : memref<1x1280xf32, #tpu.memory_space<vmem>>, vector<1x32xf32>
    %cst_37 = arith.constant dense<0.000000e+00> : vector<16xf32>
    %68 = vector.multi_reduction <add>, %65, %cst_37 [1] : vector<16x32xf32> to vector<16xf32>
    %69 = vector.shape_cast %68 : vector<16xf32> to vector<16x1xf32>
    %cst_38 = arith.constant 3.200000e+01 : f32
    %70 = vector.broadcast %cst_38 : f32 to vector<16x1xf32>
    %71 = arith.divf %69, %70 : vector<16x1xf32>
    %72 = vector.broadcast %71 : vector<16x1xf32> to vector<16x32xf32>
    %73 = arith.subf %65, %72 : vector<16x32xf32>
    %74 = arith.mulf %73, %73 : vector<16x32xf32>
    %cst_39 = arith.constant dense<0.000000e+00> : vector<16xf32>
    %75 = vector.multi_reduction <add>, %74, %cst_39 [1] : vector<16x32xf32> to vector<16xf32>
    %76 = vector.shape_cast %75 : vector<16xf32> to vector<16x1xf32>
    %cst_40 = arith.constant 3.200000e+01 : f32
    %77 = vector.broadcast %cst_40 : f32 to vector<16x1xf32>
    %78 = arith.divf %76, %77 : vector<16x1xf32>
    %79 = vector.broadcast %71 : vector<16x1xf32> to vector<16x32xf32>
    %80 = arith.subf %65, %79 : vector<16x32xf32>
    %cst_41 = arith.constant 9.99999974E-6 : f32
    %81 = vector.broadcast %cst_41 : f32 to vector<16x1xf32>
    %82 = arith.addf %78, %81 : vector<16x1xf32>
    %83 = math.rsqrt %82 : vector<16x1xf32>
    %84 = vector.broadcast %83 : vector<16x1xf32> to vector<16x32xf32>
    %85 = arith.mulf %80, %84 : vector<16x32xf32>
    %86 = vector.broadcast %66 : vector<1x32xf32> to vector<16x32xf32>
    %87 = arith.mulf %85, %86 : vector<16x32xf32>
    %88 = vector.broadcast %67 : vector<1x32xf32> to vector<16x32xf32>
    %89 = arith.addf %87, %88 : vector<16x32xf32>
    %90 = arith.addf %0, %89 : vector<16x32xf32>
    %c0_42 = arith.constant 0 : index
    %c0_43 = arith.constant 0 : index
    %91 = vector.load %arg10[%c0_42, %c0_43] : memref<16x32xf32, #tpu.memory_space<vmem>>, vector<16x32xf32>
    tpu.vector_store %arg10[%c0_42, %c0_43], %90 {strides = array<i32>} : memref<16x32xf32, #tpu.memory_space<vmem>>, vector<16x32xf32>,
    return
  }
  func.func @transform_0(%arg0: i32) -> (i32, i32) {
    %c0_i32 = arith.constant 0 : i32
    %c0_i32_0 = arith.constant 0 : i32
    return %arg0, %c0_i32 : i32, i32
  }
  func.func @transform_1(%arg0: i32) -> (i32, i32) {
    %c0_i32 = arith.constant 0 : i32
    %c0_i32_0 = arith.constant 0 : i32
    %c0_i32_1 = arith.constant 0 : i32
    return %c0_i32, %c0_i32_0 : i32, i32
  }
  func.func @transform_2(%arg0: i32) -> (i32, i32) {
    %c0_i32 = arith.constant 0 : i32
    %c0_i32_0 = arith.constant 0 : i32
    %c0_i32_1 = arith.constant 0 : i32
    return %c0_i32, %c0_i32_0 : i32, i32
  }
  func.func @transform_3(%arg0: i32) -> (i32, i32) {
    %c0_i32 = arith.constant 0 : i32
    %c0_i32_0 = arith.constant 0 : i32
    %c0_i32_1 = arith.constant 0 : i32
    return %c0_i32, %c0_i32_0 : i32, i32
  }
  func.func @transform_4(%arg0: i32) -> (i32, i32) {
    %c0_i32 = arith.constant 0 : i32
    %c0_i32_0 = arith.constant 0 : i32
    %c0_i32_1 = arith.constant 0 : i32
    return %c0_i32, %c0_i32_0 : i32, i32
  }
  func.func @transform_5(%arg0: i32) -> (i32, i32) {
    %c0_i32 = arith.constant 0 : i32
    %c0_i32_0 = arith.constant 0 : i32
    %c0_i32_1 = arith.constant 0 : i32
    return %c0_i32, %c0_i32_0 : i32, i32
  }
  func.func @transform_6(%arg0: i32) -> (i32, i32) {
    %c0_i32 = arith.constant 0 : i32
    %c0_i32_0 = arith.constant 0 : i32
    %c0_i32_1 = arith.constant 0 : i32
    return %c0_i32, %c0_i32_0 : i32, i32
  }
  func.func @transform_7(%arg0: i32) -> (i32, i32) {
    %c0_i32 = arith.constant 0 : i32
    %c0_i32_0 = arith.constant 0 : i32
    %c0_i32_1 = arith.constant 0 : i32
    return %c0_i32, %c0_i32_0 : i32, i32
  }
  func.func @transform_8(%arg0: i32) -> (i32, i32) {
    %c0_i32 = arith.constant 0 : i32
    %c0_i32_0 = arith.constant 0 : i32
    %c0_i32_1 = arith.constant 0 : i32
    return %c0_i32, %c0_i32_0 : i32, i32
  }
  func.func @transform_9(%arg0: i32) -> (i32, i32) {
    %c0_i32 = arith.constant 0 : i32
    %c0_i32_0 = arith.constant 0 : i32
    return %arg0, %c0_i32 : i32, i32
  }
}

</mosaic_0001>

<llo_original>
// kernel: tpu_custom_call.1
$region0: #{tpu_custom_call.1}
  #allocation0 [shape = 'u32[]', space=smem, size = 0x4, offset = 0x4, fixed_abs, tag = 'smem constant byte address 0x4 - core index']
  #allocation1 [shape = 'u32[144,128]{1,0:T(1,128)}', space=vmem, size = 0x12000, scoped, tag = 'internal scratch']
  %s0 = inlined_call_operand.vmem [shape: f32[16,32], index: 0, kind: input, shape index: {}]
  %s1 = inlined_call_operand.vmem [shape: f32[32,384], index: 1, kind: input, shape index: {}]
  %s2 = inlined_call_operand.vmem [shape: f32[128,16], index: 2, kind: input, shape index: {}]
  %s3 = inlined_call_operand.vmem [shape: f32[16,16], index: 3, kind: input, shape index: {}]
  %s4 = inlined_call_operand.vmem [shape: f32[16,128], index: 4, kind: input, shape index: {}]
  %s5 = inlined_call_operand.vmem [shape: f32[128,32], index: 5, kind: input, shape index: {}]
  %s6 = inlined_call_operand.vmem [shape: f32[32,64], index: 6, kind: input, shape index: {}]
  %s7 = inlined_call_operand.vmem [shape: f32[64,32], index: 7, kind: input, shape index: {}]
  %s8 = inlined_call_operand.vmem [shape: f32[1,1280], index: 8, kind: input, shape index: {}]
  %s9 = inlined_call_operand.hbm [shape: f32[16,32], index: 9, kind: output, shape index: {}]
  %s10 = sld [smem:[#allocation0]]
  $region46: #{tpu_custom_call.1} parent=0
    _
  %s12 = ssub.s32 1, %s10
  %s13 = scalar_select 0, %s12, %s10
  $region1: #{tpu_custom_call.1} parent=0
    #allocation2 [shape = 'u8[8192]{0}', space=vmem, size = 0x2000, scoped, tag = 'output window, operand 0, single buffered']
    #allocation3 [shape = 's32[1]{0}', space=sflag, size = 0x4, scoped, tag = 'scoped memory for tpu_custom_call.1']
    %14 = vsyncpa [#allocation3], 0
    // Predicated region
    $region2: #{tpu_custom_call.1} parent=1 // pred_check
      _
    $region3: #{tpu_custom_call.1} parent=1 // pred_check_branch
      %16 = sbr.rel (0) target = $region5
    $region4: #{tpu_custom_call.1} parent=1 // pred_region
      _
    $region5: #{tpu_custom_call.1} parent=1 // pred_fallthru
      _
    // Predicated region
    $region6: #{tpu_custom_call.1} parent=1 // pred_check
      _
    $region7: #{tpu_custom_call.1} parent=1 // pred_check_branch
      %18 = sbr.rel (0) target = $region9
    $region8: #{tpu_custom_call.1} parent=1 // pred_region
      _
    $region9: #{tpu_custom_call.1} parent=1 // pred_fallthru
      _
    // Predicated region
    $region10: #{tpu_custom_call.1} parent=1 // pred_check
      _
    $region11: #{tpu_custom_call.1} parent=1 // pred_check_branch
      %20 = sbr.rel (0) target = $region13
    $region12: #{tpu_custom_call.1} parent=1 // pred_region
      _
    $region13: #{tpu_custom_call.1} parent=1 // pred_fallthru
      _
    // Predicated region
    $region14: #{tpu_custom_call.1} parent=1 // pred_check
      _
    $region15: #{tpu_custom_call.1} parent=1 // pred_check_branch
      %22 = sbr.rel (0) target = $region17
    $region16: #{tpu_custom_call.1} parent=1 // pred_region
      _
    $region17: #{tpu_custom_call.1} parent=1 // pred_fallthru
      _
    // Predicated region
    $region18: #{tpu_custom_call.1} parent=1 // pred_check
      _
    $region19: #{tpu_custom_call.1} parent=1 // pred_check_branch
      %24 = sbr.rel (0) target = $region21
    $region20: #{tpu_custom_call.1} parent=1 // pred_region
      _
    $region21: #{tpu_custom_call.1} parent=1 // pred_fallthru
      _
    // Predicated region
    $region22: #{tpu_custom_call.1} parent=1 // pred_check
      _
    $region23: #{tpu_custom_call.1} parent=1 // pred_check_branch
      %26 = sbr.rel (0) target = $region25
    $region24: #{tpu_custom_call.1} parent=1 // pred_region
      _
    $region25: #{tpu_custom_call.1} parent=1 // pred_fallthru
      _
    // Predicated region
    $region26: #{tpu_custom_call.1} parent=1 // pred_check
      _
    $region27: #{tpu_custom_call.1} parent=1 // pred_check_branch
      %28 = sbr.rel (0) target = $region29
    $region28: #{tpu_custom_call.1} parent=1 // pred_region
      _
    $region29: #{tpu_custom_call.1} parent=1 // pred_fallthru
      _
    // Predicated region
    $region30: #{tpu_custom_call.1} parent=1 // pred_check
      _
    $region31: #{tpu_custom_call.1} parent=1 // pred_check_branch
      %30 = sbr.rel (0) target = $region33
    $region32: #{tpu_custom_call.1} parent=1 // pred_region
      _
    $region33: #{tpu_custom_call.1} parent=1 // pred_fallthru
      _
    // Predicated region
    $region34: #{tpu_custom_call.1} parent=1 // pred_check
      _
    $region35: #{tpu_custom_call.1} parent=1 // pred_check_branch
      %32 = sbr.rel (0) target = $region37
    $region36: #{tpu_custom_call.1} parent=1 // pred_region
      _
    $region37: #{tpu_custom_call.1} parent=1 // pred_fallthru
      _
    %v33 = vld [vmem:[%s0] sm:$0xff]
    %v34 = vld [vmem:[%s0 + $0x8] sm:$0xff]
    %v35 = vld [vmem:[%s1] sm:$0xff]
    %v36 = vld [vmem:[%s1 + $0x8] sm:$0xff]
    %v37 = vld [vmem:[%s1 + $0x10] sm:$0xff]
    %v38 = vld [vmem:[%s1 + $0x18] sm:$0xff]
    %v39 = vld [vmem:[%s1 + $0x20] sm:$0xff]
    %v40 = vld [vmem:[%s1 + $0x28] sm:$0xff]
    %v41 = vld [vmem:[%s1 + $0x30] sm:$0xff]
    %v42 = vld [vmem:[%s1 + $0x38] sm:$0xff]
    %v43 = vld [vmem:[%s1 + $0x40] sm:$0xff]
    %v44 = vld [vmem:[%s1 + $0x48] sm:$0xff]
    %v45 = vld [vmem:[%s1 + $0x50] sm:$0xff]
    %v46 = vld [vmem:[%s1 + $0x58] sm:$0xff]
    %v47 = vld [vmem:[%s8] sm:$0x7]
    %v49 = vlaneseq
    %v50 = vshrl.u32 %v49, 7
    %v51 = vsub.s32 0, %v50
    %v52 = vrot.slane %v47, %v51
    %v53 = vlaneseq
    %v54 = vshrl.u32 %v53, 7
    %v55 = vsub.s32 1, %v54
    %v56 = vrot.slane %v47, %v55
    %v57 = vlaneseq
    %v58 = vshrl.u32 %v57, 7
    %v59 = vsub.s32 2, %v58
    %v60 = vrot.slane %v47, %v59
    %vm64 = vcmask 261120
    %v66 = vsel %vm64, %v33, 0
    %v69 = vsel %vm64, %v34, 0
    %71 = vmatprep.subr.mxu0 0.0
    %72 = vmatpush1.msra.mxu0 0.0
    %73 = vmatprep.subr.mxu0 0.0
    %74 = vmatpush1.msra.mxu0 0.0
    %75 = vmatprep.subr.mxu0 0.0
    %76 = vmatpush1.msra.mxu0 0.0
    %77 = vmatprep.subr.mxu0 0.0
    %78 = vmatpush1.msra.mxu0 0.0
    %79 = vmatprep.subr.mxu0 0.0
    %80 = vmatpush1.msra.mxu0 0.0
    %81 = vmatprep.subr.mxu0 0.0
    %82 = vmatpush1.msra.mxu0 0.0
    %83 = vmatprep.subr.mxu0 0.0
    %84 = vmatpush1.msra.mxu0 0.0
    %85 = vmatprep.subr.mxu0 0.0
    %86 = vmatpush1.msra.mxu0 0.0
    %87 = vmatprep.subr.mxu0 0.0
    %88 = vmatpush1.msra.mxu0 0.0
    %89 = vmatprep.subr.mxu0 0.0
    %90 = vmatpush1.msra.mxu0 0.0
    %91 = vmatprep.subr.mxu0 0.0
    %92 = vmatpush1.msra.mxu0 0.0
    %93 = vmatprep.subr.mxu0 0.0
    %94 = vmatpush1.msra.mxu0 0.0
    %95 = vmatprep.subr.mxu0 %v45
    %96 = vmatpush1.msra.mxu0 %v44
    %97 = vmatprep.subr.mxu0 %v42
    %98 = vmatpush1.msra.mxu0 %v41
    %99 = vmatprep.subr.mxu0 %v39
    %100 = vmatpush1.msra.mxu0 %v38
    %101 = vmatprep.subr.mxu0 %v36
    %102 = vmatpush1.msra.mxu0 %v35
    %103 = vmatprep.subr.mxu0 0.0
    %104 = vmatpush2.msra.mxu0 0.0
    %105 = vmatprep.subr.mxu0 0.0
    %106 = vmatpush2.msra.mxu0 0.0
    %107 = vmatprep.subr.mxu0 0.0
    %108 = vmatpush2.msra.mxu0 0.0
    %109 = vmatprep.subr.mxu0 0.0
    %110 = vmatpush2.msra.mxu0 0.0
    %111 = vmatprep.subr.mxu0 0.0
    %112 = vmatpush2.msra.mxu0 0.0
    %113 = vmatprep.subr.mxu0 0.0
    %114 = vmatpush2.msra.mxu0 0.0
    %115 = vmatprep.subr.mxu0 0.0
    %116 = vmatpush2.msra.mxu0 0.0
    %117 = vmatprep.subr.mxu0 0.0
    %118 = vmatpush2.msra.mxu0 0.0
    %119 = vmatprep.subr.mxu0 0.0
    %120 = vmatpush2.msra.mxu0 0.0
    %121 = vmatprep.subr.mxu0 0.0
    %122 = vmatpush2.msra.mxu0 0.0
    %123 = vmatprep.subr.mxu0 0.0
    %124 = vmatpush2.msra.mxu0 0.0
    %125 = vmatprep.subr.mxu0 0.0
    %126 = vmatpush2.msra.mxu0 0.0
    %127 = vmatprep.subr.mxu0 0.0
    %128 = vmatpush2.msra.mxu0 0.0
    %129 = vmatprep.subr.mxu0 0.0
    %130 = vmatpush2.msra.mxu0 0.0
    %131 = vmatprep.subr.mxu0 0.0
    %132 = vmatpush2.msra.mxu0 0.0
    %133 = vmatprep.subr.mxu0 0.0
    %134 = vmatpush2.msra.mxu0 0.0
    %135 = vmatprep.mubr.f32.mxu0 0.0
    %136 = vmatmul.mubr.f32.gmra.mxu0 %v66
    %v137 = vpop.f32.mrf.mxu0
    %v138 = vadd.f32 %v52, %v137
    %v139 = vpop.f32.mrf.mxu0
    %v140 = vadd.f32 %v56, %v139
    %141 = vmatprep.mubr.f32.mxu0 0.0
    %142 = vmatmul.mubr.f32.gmra.mxu0 %v69
    %v143 = vpop.f32.mrf.mxu0
    %v144 = vadd.f32 %v52, %v143
    %v145 = vpop.f32.mrf.mxu0
    %v146 = vadd.f32 %v56, %v145
    %147 = vdwg.mxu0
    %148 = vmatprep.subr.mxu0 0.0
    %149 = vmatpush1.msra.mxu0 0.0
    %150 = vmatprep.subr.mxu0 0.0
    %151 = vmatpush1.msra.mxu0 0.0
    %152 = vmatprep.subr.mxu0 0.0
    %153 = vmatpush1.msra.mxu0 0.0
    %154 = vmatprep.subr.mxu0 0.0
    %155 = vmatpush1.msra.mxu0 0.0
    %156 = vmatprep.subr.mxu0 0.0
    %157 = vmatpush1.msra.mxu0 0.0
    %158 = vmatprep.subr.mxu0 0.0
    %159 = vmatpush1.msra.mxu0 0.0
    %160 = vmatprep.subr.mxu0 0.0
    %161 = vmatpush1.msra.mxu0 0.0
    %162 = vmatprep.subr.mxu0 0.0
    %163 = vmatpush1.msra.mxu0 0.0
    %164 = vmatprep.subr.mxu0 0.0
    %165 = vmatpush1.msra.mxu0 0.0
    %166 = vmatprep.subr.mxu0 0.0
    %167 = vmatpush1.msra.mxu0 0.0
    %168 = vmatprep.subr.mxu0 0.0
    %169 = vmatpush1.msra.mxu0 0.0
    %170 = vmatprep.subr.mxu0 0.0
    %171 = vmatpush1.msra.mxu0 0.0
    %172 = vmatprep.subr.mxu0 0.0
    %173 = vmatpush1.msra.mxu0 %v46
    %174 = vmatprep.subr.mxu0 0.0
    %175 = vmatpush1.msra.mxu0 %v43
    %176 = vmatprep.subr.mxu0 0.0
    %177 = vmatpush1.msra.mxu0 %v40
    %178 = vmatprep.subr.mxu0 0.0
    %179 = vmatpush1.msra.mxu0 %v37
    %180 = vmatprep.subr.mxu0 0.0
    %181 = vmatpush2.msra.mxu0 0.0
    %182 = vmatprep.subr.mxu0 0.0
    %183 = vmatpush2.msra.mxu0 0.0
    %184 = vmatprep.subr.mxu0 0.0
    %185 = vmatpush2.msra.mxu0 0.0
    %186 = vmatprep.subr.mxu0 0.0
    %187 = vmatpush2.msra.mxu0 0.0
    %188 = vmatprep.subr.mxu0 0.0
    %189 = vmatpush2.msra.mxu0 0.0
    %190 = vmatprep.subr.mxu0 0.0
    %191 = vmatpush2.msra.mxu0 0.0
    %192 = vmatprep.subr.mxu0 0.0
    %193 = vmatpush2.msra.mxu0 0.0
    %194 = vmatprep.subr.mxu0 0.0
    %195 = vmatpush2.msra.mxu0 0.0
    %196 = vmatprep.subr.mxu0 0.0
    %197 = vmatpush2.msra.mxu0 0.0
    %198 = vmatprep.subr.mxu0 0.0
    %199 = vmatpush2.msra.mxu0 0.0
    %200 = vmatprep.subr.mxu0 0.0
    %201 = vmatpush2.msra.mxu0 0.0
    %202 = vmatprep.subr.mxu0 0.0
    %203 = vmatpush2.msra.mxu0 0.0
    %204 = vmatprep.subr.mxu0 0.0
    %205 = vmatpush2.msra.mxu0 0.0
    %206 = vmatprep.subr.mxu0 0.0
    %207 = vmatpush2.msra.mxu0 0.0
    %208 = vmatprep.subr.mxu0 0.0
    %209 = vmatpush2.msra.mxu0 0.0
    %210 = vmatprep.subr.mxu0 0.0
    %211 = vmatpush2.msra.mxu0 0.0
    %212 = vmatprep.mubr.f32.mxu0 0.0
    %213 = vmatmul.mubr.f32.gmra.mxu0 %v66
    %v214 = vpop.f32.mrf.mxu0
    %v215 = vadd.f32 %v60, %v214
    %v216 = vpop.f32.mrf.mxu0
    %217 = vmatprep.mubr.f32.mxu0 0.0
    %218 = vmatmul.mubr.f32.gmra.mxu0 %v69
    %v219 = vpop.f32.mrf.mxu0
    %v220 = vadd.f32 %v60, %v219
    %v221 = vpop.f32.mrf.mxu0
    %222 = vdwg.mxu0
    %v223 = vmul.f32 %v138, %v140
    %v224 = vmul.f32 %v144, %v146
    %v225 = vld [vmem:[%s2] sm:$0xff]
    %v226 = vld [vmem:[%s2 + $0x8] sm:$0xff]
    %v227 = vld [vmem:[%s2 + $0x10] sm:$0xff]
    %v228 = vld [vmem:[%s2 + $0x18] sm:$0xff]
    %v229 = vld [vmem:[%s2 + $0x20] sm:$0xff]
    %v230 = vld [vmem:[%s2 + $0x28] sm:$0xff]
    %v231 = vld [vmem:[%s2 + $0x30] sm:$0xff]
    %v232 = vld [vmem:[%s2 + $0x38] sm:$0xff]
    %v233 = vld [vmem:[%s2 + $0x40] sm:$0xff]
    %v234 = vld [vmem:[%s2 + $0x48] sm:$0xff]
    %v235 = vld [vmem:[%s2 + $0x50] sm:$0xff]
    %v236 = vld [vmem:[%s2 + $0x58] sm:$0xff]
    %v237 = vld [vmem:[%s2 + $0x60] sm:$0xff]
    %v238 = vld [vmem:[%s2 + $0x68] sm:$0xff]
    %v239 = vld [vmem:[%s2 + $0x70] sm:$0xff]
    %v240 = vld [vmem:[%s2 + $0x78] sm:$0xff]
    %241 = vmatprep.subr.mxu0 0.0
    %242 = vmatpush1.msra.mxu0 %v240
    %243 = vmatprep.subr.mxu0 0.0
    %244 = vmatpush1.msra.mxu0 %v239
    %245 = vmatprep.subr.mxu0 0.0
    %246 = vmatpush1.msra.mxu0 %v238
    %247 = vmatprep.subr.mxu0 0.0
    %248 = vmatpush1.msra.mxu0 %v237
    %249 = vmatprep.subr.mxu0 0.0
    %250 = vmatpush1.msra.mxu0 %v236
    %251 = vmatprep.subr.mxu0 0.0
    %252 = vmatpush1.msra.mxu0 %v235
    %253 = vmatprep.subr.mxu0 0.0
    %254 = vmatpush1.msra.mxu0 %v234
    %255 = vmatprep.subr.mxu0 0.0
    %256 = vmatpush1.msra.mxu0 %v233
    %257 = vmatprep.subr.mxu0 0.0
    %258 = vmatpush1.msra.mxu0 %v232
    %259 = vmatprep.subr.mxu0 0.0
    %260 = vmatpush1.msra.mxu0 %v231
    %261 = vmatprep.subr.mxu0 0.0
    %262 = vmatpush1.msra.mxu0 %v230
    %263 = vmatprep.subr.mxu0 0.0
    %264 = vmatpush1.msra.mxu0 %v229
    %265 = vmatprep.subr.mxu0 0.0
    %266 = vmatpush1.msra.mxu0 %v228
    %267 = vmatprep.subr.mxu0 0.0
    %268 = vmatpush1.msra.mxu0 %v227
    %269 = vmatprep.subr.mxu0 0.0
    %270 = vmatpush1.msra.mxu0 %v226
    %271 = vmatprep.subr.mxu0 0.0
    %272 = vmatpush1.msra.mxu0 %v225
    %273 = vmatprep.subr.mxu0 0.0
    %274 = vmatpush2.msra.mxu0 0.0
    %275 = vmatprep.subr.mxu0 0.0
    %276 = vmatpush2.msra.mxu0 0.0
    %277 = vmatprep.subr.mxu0 0.0
    %278 = vmatpush2.msra.mxu0 0.0
    %279 = vmatprep.subr.mxu0 0.0
    %280 = vmatpush2.msra.mxu0 0.0
    %281 = vmatprep.subr.mxu0 0.0
    %282 = vmatpush2.msra.mxu0 0.0
    %283 = vmatprep.subr.mxu0 0.0
    %284 = vmatpush2.msra.mxu0 0.0
    %285 = vmatprep.subr.mxu0 0.0
    %286 = vmatpush2.msra.mxu0 0.0
    %287 = vmatprep.subr.mxu0 0.0
    %288 = vmatpush2.msra.mxu0 0.0
    %289 = vmatprep.subr.mxu0 0.0
    %290 = vmatpush2.msra.mxu0 0.0
    %291 = vmatprep.subr.mxu0 0.0
    %292 = vmatpush2.msra.mxu0 0.0
    %293 = vmatprep.subr.mxu0 0.0
    %294 = vmatpush2.msra.mxu0 0.0
    %295 = vmatprep.subr.mxu0 0.0
    %296 = vmatpush2.msra.mxu0 0.0
    %297 = vmatprep.subr.mxu0 0.0
    %298 = vmatpush2.msra.mxu0 0.0
    %299 = vmatprep.subr.mxu0 0.0
    %300 = vmatpush2.msra.mxu0 0.0
    %301 = vmatprep.subr.mxu0 0.0
    %302 = vmatpush2.msra.mxu0 0.0
    %303 = vmatprep.subr.mxu0 0.0
    %304 = vmatpush2.msra.mxu0 0.0
    %305 = vmatprep.mubr.f32.mxu0 0.0
    %306 = vmatmul.mubr.f32.gmra.mxu0 %v223
    %v307 = vpop.f32.mrf.mxu0
    %v308 = vadd.f32 0.0, %v307
    %v309 = vpop.f32.mrf.mxu0
    %310 = vmatprep.mubr.f32.mxu0 0.0
    %311 = vmatmul.mubr.f32.gmra.mxu0 %v224
    %v312 = vpop.f32.mrf.mxu0
    %v313 = vadd.f32 0.0, %v312
    %v314 = vpop.f32.mrf.mxu0
    %315 = vdwg.mxu0
    %vm316 = vcmask 130048
    %v317 = vsel %vm316, %v308, -inf
    %318 = vmax.xlane.f32.xlu0 %v317
    %v319 = vpop.xlane.xlu0 %318
    %v320 = vsel %vm316, %v313, -inf
    %321 = vmax.xlane.f32.xlu0 %v320
    %v322 = vpop.xlane.xlu0 %321
    %v323 = vsub.f32 %v308, %v319
    %v324 = vsub.f32 %v313, %v322
    %v325 = vmul.f32 %v323, 1.442695
    %v326 = vpow.pop %v325
    %v327 = vmul.f32 %v324, 1.442695
    %v328 = vpow.pop %v327
    %v329 = vld [vmem:[%s3] sm:$0xff]
    %v330 = vld [vmem:[%s3 + $0x8] sm:$0xff]
    %v332 = vsel %vm316, %v326, 0
    %v335 = vsel %vm316, %v328, 0
    %337 = vmatprep.subr.mxu0 0.0
    %338 = vmatpush1.msra.mxu0 0.0
    %339 = vmatprep.subr.mxu0 0.0
    %340 = vmatpush1.msra.mxu0 0.0
    %341 = vmatprep.subr.mxu0 0.0
    %342 = vmatpush1.msra.mxu0 0.0
    %343 = vmatprep.subr.mxu0 0.0
    %344 = vmatpush1.msra.mxu0 0.0
    %345 = vmatprep.subr.mxu0 0.0
    %346 = vmatpush1.msra.mxu0 0.0
    %347 = vmatprep.subr.mxu0 0.0
    %348 = vmatpush1.msra.mxu0 0.0
    %349 = vmatprep.subr.mxu0 0.0
    %350 = vmatpush1.msra.mxu0 0.0
    %351 = vmatprep.subr.mxu0 0.0
    %352 = vmatpush1.msra.mxu0 0.0
    %353 = vmatprep.subr.mxu0 0.0
    %354 = vmatpush1.msra.mxu0 0.0
    %355 = vmatprep.subr.mxu0 0.0
    %356 = vmatpush1.msra.mxu0 0.0
    %357 = vmatprep.subr.mxu0 0.0
    %358 = vmatpush1.msra.mxu0 0.0
    %359 = vmatprep.subr.mxu0 0.0
    %360 = vmatpush1.msra.mxu0 0.0
    %361 = vmatprep.subr.mxu0 0.0
    %362 = vmatpush1.msra.mxu0 0.0
    %363 = vmatprep.subr.mxu0 0.0
    %364 = vmatpush1.msra.mxu0 0.0
    %365 = vmatprep.subr.mxu0 0.0
    %366 = vmatpush1.msra.mxu0 %v330
    %367 = vmatprep.subr.mxu0 0.0
    %368 = vmatpush1.msra.mxu0 %v329
    %369 = vmatprep.subr.mxu0 0.0
    %370 = vmatpush2.msra.mxu0 0.0
    %371 = vmatprep.subr.mxu0 0.0
    %372 = vmatpush2.msra.mxu0 0.0
    %373 = vmatprep.subr.mxu0 0.0
    %374 = vmatpush2.msra.mxu0 0.0
    %375 = vmatprep.subr.mxu0 0.0
    %376 = vmatpush2.msra.mxu0 0.0
    %377 = vmatprep.subr.mxu0 0.0
    %378 = vmatpush2.msra.mxu0 0.0
    %379 = vmatprep.subr.mxu0 0.0
    %380 = vmatpush2.msra.mxu0 0.0
    %381 = vmatprep.subr.mxu0 0.0
    %382 = vmatpush2.msra.mxu0 0.0
    %383 = vmatprep.subr.mxu0 0.0
    %384 = vmatpush2.msra.mxu0 0.0
    %385 = vmatprep.subr.mxu0 0.0
    %386 = vmatpush2.msra.mxu0 0.0
    %387 = vmatprep.subr.mxu0 0.0
    %388 = vmatpush2.msra.mxu0 0.0
    %389 = vmatprep.subr.mxu0 0.0
    %390 = vmatpush2.msra.mxu0 0.0
    %391 = vmatprep.subr.mxu0 0.0
    %392 = vmatpush2.msra.mxu0 0.0
    %393 = vmatprep.subr.mxu0 0.0
    %394 = vmatpush2.msra.mxu0 0.0
    %395 = vmatprep.subr.mxu0 0.0
    %396 = vmatpush2.msra.mxu0 0.0
    %397 = vmatprep.subr.mxu0 0.0
    %398 = vmatpush2.msra.mxu0 0.0
    %399 = vmatprep.subr.mxu0 0.0
    %400 = vmatpush2.msra.mxu0 0.0
    %401 = vmatprep.mubr.f32.mxu0 0.0
    %402 = vmatmul.mubr.f32.gmra.mxu0 %v332
    %v403 = vpop.f32.mrf.mxu0
    %v404 = vadd.f32 0.0, %v403
    %v405 = vpop.f32.mrf.mxu0
    %406 = vmatprep.mubr.f32.mxu0 0.0
    %407 = vmatmul.mubr.f32.gmra.mxu0 %v335
    %v408 = vpop.f32.mrf.mxu0
    %v409 = vadd.f32 0.0, %v408
    %v410 = vpop.f32.mrf.mxu0
    %411 = vdwg.mxu0
    %v412 = vrcp.pop %v404
    %v413 = vrcp.pop %v409
    %v414 = vmul.f32 %v326, %v412
    %v415 = vmul.f32 %v328, %v413
    %v416 = vld [vmem:[%s4] sm:$0xff]
    %v417 = vld [vmem:[%s4 + $0x8] sm:$0xff]
    %v419 = vsel %vm316, %v414, 0
    %v422 = vsel %vm316, %v415, 0
    %424 = vmatprep.subr.mxu0 0.0
    %425 = vmatpush1.msra.mxu0 0.0
    %426 = vmatprep.subr.mxu0 0.0
    %427 = vmatpush1.msra.mxu0 0.0
    %428 = vmatprep.subr.mxu0 0.0
    %429 = vmatpush1.msra.mxu0 0.0
    %430 = vmatprep.subr.mxu0 0.0
    %431 = vmatpush1.msra.mxu0 0.0
    %432 = vmatprep.subr.mxu0 0.0
    %433 = vmatpush1.msra.mxu0 0.0
    %434 = vmatprep.subr.mxu0 0.0
    %435 = vmatpush1.msra.mxu0 0.0
    %436 = vmatprep.subr.mxu0 0.0
    %437 = vmatpush1.msra.mxu0 0.0
    %438 = vmatprep.subr.mxu0 0.0
    %439 = vmatpush1.msra.mxu0 0.0
    %440 = vmatprep.subr.mxu0 0.0
    %441 = vmatpush1.msra.mxu0 0.0
    %442 = vmatprep.subr.mxu0 0.0
    %443 = vmatpush1.msra.mxu0 0.0
    %444 = vmatprep.subr.mxu0 0.0
    %445 = vmatpush1.msra.mxu0 0.0
    %446 = vmatprep.subr.mxu0 0.0
    %447 = vmatpush1.msra.mxu0 0.0
    %448 = vmatprep.subr.mxu0 0.0
    %449 = vmatpush1.msra.mxu0 0.0
    %450 = vmatprep.subr.mxu0 0.0
    %451 = vmatpush1.msra.mxu0 0.0
    %452 = vmatprep.subr.mxu0 0.0
    %453 = vmatpush1.msra.mxu0 %v417
    %454 = vmatprep.subr.mxu0 0.0
    %455 = vmatpush1.msra.mxu0 %v416
    %456 = vmatprep.subr.mxu0 0.0
    %457 = vmatpush2.msra.mxu0 0.0
    %458 = vmatprep.subr.mxu0 0.0
    %459 = vmatpush2.msra.mxu0 0.0
    %460 = vmatprep.subr.mxu0 0.0
    %461 = vmatpush2.msra.mxu0 0.0
    %462 = vmatprep.subr.mxu0 0.0
    %463 = vmatpush2.msra.mxu0 0.0
    %464 = vmatprep.subr.mxu0 0.0
    %465 = vmatpush2.msra.mxu0 0.0
    %466 = vmatprep.subr.mxu0 0.0
    %467 = vmatpush2.msra.mxu0 0.0
    %468 = vmatprep.subr.mxu0 0.0
    %469 = vmatpush2.msra.mxu0 0.0
    %470 = vmatprep.subr.mxu0 0.0
    %471 = vmatpush2.msra.mxu0 0.0
    %472 = vmatprep.subr.mxu0 0.0
    %473 = vmatpush2.msra.mxu0 0.0
    %474 = vmatprep.subr.mxu0 0.0
    %475 = vmatpush2.msra.mxu0 0.0
    %476 = vmatprep.subr.mxu0 0.0
    %477 = vmatpush2.msra.mxu0 0.0
    %478 = vmatprep.subr.mxu0 0.0
    %479 = vmatpush2.msra.mxu0 0.0
    %480 = vmatprep.subr.mxu0 0.0
    %481 = vmatpush2.msra.mxu0 0.0
    %482 = vmatprep.subr.mxu0 0.0
    %483 = vmatpush2.msra.mxu0 0.0
    %484 = vmatprep.subr.mxu0 0.0
    %485 = vmatpush2.msra.mxu0 0.0
    %486 = vmatprep.subr.mxu0 0.0
    %487 = vmatpush2.msra.mxu0 0.0
    %488 = vmatprep.mubr.f32.mxu0 0.0
    %489 = vmatmul.mubr.f32.gmra.mxu0 %v419
    %v490 = vpop.f32.mrf.mxu0
    %v491 = vadd.f32 0.0, %v490
    %v492 = vpop.f32.mrf.mxu0
    %493 = vmatprep.mubr.f32.mxu0 0.0
    %494 = vmatmul.mubr.f32.gmra.mxu0 %v422
    %v495 = vpop.f32.mrf.mxu0
    %v496 = vadd.f32 0.0, %v495
    %v497 = vpop.f32.mrf.mxu0
    %498 = vdwg.mxu0
    %v499 = vmul.f32 %v491, %v215
    %v500 = vmul.f32 %v496, %v220
    %v501 = vld [vmem:[%s5] sm:$0xff]
    %v502 = vld [vmem:[%s5 + $0x8] sm:$0xff]
    %v503 = vld [vmem:[%s5 + $0x10] sm:$0xff]
    %v504 = vld [vmem:[%s5 + $0x18] sm:$0xff]
    %v505 = vld [vmem:[%s5 + $0x20] sm:$0xff]
    %v506 = vld [vmem:[%s5 + $0x28] sm:$0xff]
    %v507 = vld [vmem:[%s5 + $0x30] sm:$0xff]
    %v508 = vld [vmem:[%s5 + $0x38] sm:$0xff]
    %v509 = vld [vmem:[%s5 + $0x40] sm:$0xff]
    %v510 = vld [vmem:[%s5 + $0x48] sm:$0xff]
    %v511 = vld [vmem:[%s5 + $0x50] sm:$0xff]
    %v512 = vld [vmem:[%s5 + $0x58] sm:$0xff]
    %v513 = vld [vmem:[%s5 + $0x60] sm:$0xff]
    %v514 = vld [vmem:[%s5 + $0x68] sm:$0xff]
    %v515 = vld [vmem:[%s5 + $0x70] sm:$0xff]
    %v516 = vld [vmem:[%s5 + $0x78] sm:$0xff]
    %v517 = vld [vmem:[%s8 + $0x3] sm:$0x1]
    %v519 = vlaneseq
    %v520 = vshrl.u32 %v519, 7
    %v521 = vsub.s32 0, %v520
    %v522 = vrot.slane %v517, %v521
    %524 = vmatprep.subr.mxu0 0.0
    %525 = vmatpush1.msra.mxu0 %v516
    %526 = vmatprep.subr.mxu0 0.0
    %527 = vmatpush1.msra.mxu0 %v515
    %528 = vmatprep.subr.mxu0 0.0
    %529 = vmatpush1.msra.mxu0 %v514
    %530 = vmatprep.subr.mxu0 0.0
    %531 = vmatpush1.msra.mxu0 %v513
    %532 = vmatprep.subr.mxu0 0.0
    %533 = vmatpush1.msra.mxu0 %v512
    %534 = vmatprep.subr.mxu0 0.0
    %535 = vmatpush1.msra.mxu0 %v511
    %536 = vmatprep.subr.mxu0 0.0
    %537 = vmatpush1.msra.mxu0 %v510
    %538 = vmatprep.subr.mxu0 0.0
    %539 = vmatpush1.msra.mxu0 %v509
    %540 = vmatprep.subr.mxu0 0.0
    %541 = vmatpush1.msra.mxu0 %v508
    %542 = vmatprep.subr.mxu0 0.0
    %543 = vmatpush1.msra.mxu0 %v507
    %544 = vmatprep.subr.mxu0 0.0
    %545 = vmatpush1.msra.mxu0 %v506
    %546 = vmatprep.subr.mxu0 0.0
    %547 = vmatpush1.msra.mxu0 %v505
    %548 = vmatprep.subr.mxu0 0.0
    %549 = vmatpush1.msra.mxu0 %v504
    %550 = vmatprep.subr.mxu0 0.0
    %551 = vmatpush1.msra.mxu0 %v503
    %552 = vmatprep.subr.mxu0 0.0
    %553 = vmatpush1.msra.mxu0 %v502
    %554 = vmatprep.subr.mxu0 0.0
    %555 = vmatpush1.msra.mxu0 %v501
    %556 = vmatprep.subr.mxu0 0.0
    %557 = vmatpush2.msra.mxu0 0.0
    %558 = vmatprep.subr.mxu0 0.0
    %559 = vmatpush2.msra.mxu0 0.0
    %560 = vmatprep.subr.mxu0 0.0
    %561 = vmatpush2.msra.mxu0 0.0
    %562 = vmatprep.subr.mxu0 0.0
    %563 = vmatpush2.msra.mxu0 0.0
    %564 = vmatprep.subr.mxu0 0.0
    %565 = vmatpush2.msra.mxu0 0.0
    %566 = vmatprep.subr.mxu0 0.0
    %567 = vmatpush2.msra.mxu0 0.0
    %568 = vmatprep.subr.mxu0 0.0
    %569 = vmatpush2.msra.mxu0 0.0
    %570 = vmatprep.subr.mxu0 0.0
    %571 = vmatpush2.msra.mxu0 0.0
    %572 = vmatprep.subr.mxu0 0.0
    %573 = vmatpush2.msra.mxu0 0.0
    %574 = vmatprep.subr.mxu0 0.0
    %575 = vmatpush2.msra.mxu0 0.0
    %576 = vmatprep.subr.mxu0 0.0
    %577 = vmatpush2.msra.mxu0 0.0
    %578 = vmatprep.subr.mxu0 0.0
    %579 = vmatpush2.msra.mxu0 0.0
    %580 = vmatprep.subr.mxu0 0.0
    %581 = vmatpush2.msra.mxu0 0.0
    %582 = vmatprep.subr.mxu0 0.0
    %583 = vmatpush2.msra.mxu0 0.0
    %584 = vmatprep.subr.mxu0 0.0
    %585 = vmatpush2.msra.mxu0 0.0
    %586 = vmatprep.subr.mxu0 0.0
    %587 = vmatpush2.msra.mxu0 0.0
    %588 = vmatprep.mubr.f32.mxu0 0.0
    %589 = vmatmul.mubr.f32.gmra.mxu0 %v499
    %v590 = vpop.f32.mrf.mxu0
    %v591 = vadd.f32 %v522, %v590
    %v592 = vpop.f32.mrf.mxu0
    %593 = vmatprep.mubr.f32.mxu0 0.0
    %594 = vmatmul.mubr.f32.gmra.mxu0 %v500
    %v595 = vpop.f32.mrf.mxu0
    %v596 = vadd.f32 %v522, %v595
    %v597 = vpop.f32.mrf.mxu0
    %598 = vdwg.mxu0
    %v599 = vld [vmem:[%s8 + $0x4] sm:$0x1]
    %v600 = vld [vmem:[%s8 + $0x5] sm:$0x1]
    %v601 = vsel %vm64, %v591, 0.0
    %602 = vadd.xlane.f32.xlu0 %v601
    %v603 = vpop.xlane.xlu0 %602
    %v604 = vsel %vm64, %v596, 0.0
    %605 = vadd.xlane.f32.xlu0 %v604
    %v606 = vpop.xlane.xlu0 %605
    %v607 = vrcp.pop 32.0
    %v608 = vmul.f32 %v603, %v607
    %v609 = vmul.f32 %v606, %v607
    %v610 = vsub.f32 %v591, %v608
    %v611 = vsub.f32 %v596, %v609
    %v612 = vmul.f32 %v610, %v610
    %v613 = vmul.f32 %v611, %v611
    %v614 = vsel %vm64, %v612, 0.0
    %615 = vadd.xlane.f32.xlu0 %v614
    %v616 = vpop.xlane.xlu0 %615
    %v617 = vsel %vm64, %v613, 0.0
    %618 = vadd.xlane.f32.xlu0 %v617
    %v619 = vpop.xlane.xlu0 %618
    %v620 = vmul.f32 %v616, %v607
    %v621 = vmul.f32 %v619, %v607
    %v622 = vadd.f32 %v620, 1e-05
    %v623 = vadd.f32 %v621, 1e-05
    %v624 = vrsqrt.pop %v622
    %v625 = vrsqrt.pop %v623
    %v626 = vmul.f32 %v610, %v624
    %v627 = vmul.f32 %v611, %v625
    %v629 = vlaneseq
    %v630 = vshrl.u32 %v629, 7
    %v631 = vsub.s32 0, %v630
    %v632 = vrot.slane %v599, %v631
    %v634 = vmul.f32 %v626, %v632
    %v635 = vmul.f32 %v627, %v632
    %v637 = vlaneseq
    %v638 = vshrl.u32 %v637, 7
    %v639 = vsub.s32 0, %v638
    %v640 = vrot.slane %v600, %v639
    %v642 = vadd.f32 %v634, %v640
    %v643 = vadd.f32 %v635, %v640
    %v644 = vadd.f32 %v33, %v642
    %v645 = vadd.f32 %v34, %v643
    %v646 = vld [vmem:[%s6] sm:$0xff]
    %v647 = vld [vmem:[%s6 + $0x8] sm:$0xff]
    %v648 = vld [vmem:[%s6 + $0x10] sm:$0xff]
    %v649 = vld [vmem:[%s6 + $0x18] sm:$0xff]
    %v650 = vld [vmem:[%s8 + $0x6] sm:$0x1]
    %v652 = vlaneseq
    %v653 = vshrl.u32 %v652, 7
    %v654 = vsub.s32 0, %v653
    %v655 = vrot.slane %v650, %v654
    %v658 = vsel %vm64, %v644, 0
    %v661 = vsel %vm64, %v645, 0
    %663 = vmatprep.subr.mxu0 0.0
    %664 = vmatpush1.msra.mxu0 0.0
    %665 = vmatprep.subr.mxu0 0.0
    %666 = vmatpush1.msra.mxu0 0.0
    %667 = vmatprep.subr.mxu0 0.0
    %668 = vmatpush1.msra.mxu0 0.0
    %669 = vmatprep.subr.mxu0 0.0
    %670 = vmatpush1.msra.mxu0 0.0
    %671 = vmatprep.subr.mxu0 0.0
    %672 = vmatpush1.msra.mxu0 0.0
    %673 = vmatprep.subr.mxu0 0.0
    %674 = vmatpush1.msra.mxu0 0.0
    %675 = vmatprep.subr.mxu0 0.0
    %676 = vmatpush1.msra.mxu0 0.0
    %677 = vmatprep.subr.mxu0 0.0
    %678 = vmatpush1.msra.mxu0 0.0
    %679 = vmatprep.subr.mxu0 0.0
    %680 = vmatpush1.msra.mxu0 0.0
    %681 = vmatprep.subr.mxu0 0.0
    %682 = vmatpush1.msra.mxu0 0.0
    %683 = vmatprep.subr.mxu0 0.0
    %684 = vmatpush1.msra.mxu0 0.0
    %685 = vmatprep.subr.mxu0 0.0
    %686 = vmatpush1.msra.mxu0 0.0
    %687 = vmatprep.subr.mxu0 0.0
    %688 = vmatpush1.msra.mxu0 %v649
    %689 = vmatprep.subr.mxu0 0.0
    %690 = vmatpush1.msra.mxu0 %v648
    %691 = vmatprep.subr.mxu0 0.0
    %692 = vmatpush1.msra.mxu0 %v647
    %693 = vmatprep.subr.mxu0 0.0
    %694 = vmatpush1.msra.mxu0 %v646
    %695 = vmatprep.subr.mxu0 0.0
    %696 = vmatpush2.msra.mxu0 0.0
    %697 = vmatprep.subr.mxu0 0.0
    %698 = vmatpush2.msra.mxu0 0.0
    %699 = vmatprep.subr.mxu0 0.0
    %700 = vmatpush2.msra.mxu0 0.0
    %701 = vmatprep.subr.mxu0 0.0
    %702 = vmatpush2.msra.mxu0 0.0
    %703 = vmatprep.subr.mxu0 0.0
    %704 = vmatpush2.msra.mxu0 0.0
    %705 = vmatprep.subr.mxu0 0.0
    %706 = vmatpush2.msra.mxu0 0.0
    %707 = vmatprep.subr.mxu0 0.0
    %708 = vmatpush2.msra.mxu0 0.0
    %709 = vmatprep.subr.mxu0 0.0
    %710 = vmatpush2.msra.mxu0 0.0
    %711 = vmatprep.subr.mxu0 0.0
    %712 = vmatpush2.msra.mxu0 0.0
    %713 = vmatprep.subr.mxu0 0.0
    %714 = vmatpush2.msra.mxu0 0.0
    %715 = vmatprep.subr.mxu0 0.0
    %716 = vmatpush2.msra.mxu0 0.0
    %717 = vmatprep.subr.mxu0 0.0
    %718 = vmatpush2.msra.mxu0 0.0
    %719 = vmatprep.subr.mxu0 0.0
    %720 = vmatpush2.msra.mxu0 0.0
    %721 = vmatprep.subr.mxu0 0.0
    %722 = vmatpush2.msra.mxu0 0.0
    %723 = vmatprep.subr.mxu0 0.0
    %724 = vmatpush2.msra.mxu0 0.0
    %725 = vmatprep.subr.mxu0 0.0
    %726 = vmatpush2.msra.mxu0 0.0
    %727 = vmatprep.mubr.f32.mxu0 0.0
    %728 = vmatmul.mubr.f32.gmra.mxu0 %v658
    %v729 = vpop.f32.mrf.mxu0
    %v730 = vadd.f32 %v655, %v729
    %v731 = vpop.f32.mrf.mxu0
    %732 = vmatprep.mubr.f32.mxu0 0.0
    %733 = vmatmul.mubr.f32.gmra.mxu0 %v661
    %v734 = vpop.f32.mrf.mxu0
    %v735 = vadd.f32 %v655, %v734
    %v736 = vpop.f32.mrf.mxu0
    %737 = vdwg.mxu0
    %v738 = vmax.f32 %v730, 0.0
    %v739 = vmax.f32 %v735, 0.0
    %v740 = vld [vmem:[%s7] sm:$0xff]
    %v741 = vld [vmem:[%s7 + $0x8] sm:$0xff]
    %v742 = vld [vmem:[%s7 + $0x10] sm:$0xff]
    %v743 = vld [vmem:[%s7 + $0x18] sm:$0xff]
    %v744 = vld [vmem:[%s7 + $0x20] sm:$0xff]
    %v745 = vld [vmem:[%s7 + $0x28] sm:$0xff]
    %v746 = vld [vmem:[%s7 + $0x30] sm:$0xff]
    %v747 = vld [vmem:[%s7 + $0x38] sm:$0xff]
    %v748 = vld [vmem:[%s8 + $0x7] sm:$0x1]
    %v750 = vlaneseq
    %v751 = vshrl.u32 %v750, 7
    %v752 = vsub.s32 0, %v751
    %v753 = vrot.slane %v748, %v752
    %vm755 = vcmask 523264
    %v757 = vsel %vm755, %v738, 0
    %v760 = vsel %vm755, %v739, 0
    %762 = vmatprep.subr.mxu0 0.0
    %763 = vmatpush1.msra.mxu0 0.0
    %764 = vmatprep.subr.mxu0 0.0
    %765 = vmatpush1.msra.mxu0 0.0
    %766 = vmatprep.subr.mxu0 0.0
    %767 = vmatpush1.msra.mxu0 0.0
    %768 = vmatprep.subr.mxu0 0.0
    %769 = vmatpush1.msra.mxu0 0.0
    %770 = vmatprep.subr.mxu0 0.0
    %771 = vmatpush1.msra.mxu0 0.0
    %772 = vmatprep.subr.mxu0 0.0
    %773 = vmatpush1.msra.mxu0 0.0
    %774 = vmatprep.subr.mxu0 0.0
    %775 = vmatpush1.msra.mxu0 0.0
    %776 = vmatprep.subr.mxu0 0.0
    %777 = vmatpush1.msra.mxu0 0.0
    %778 = vmatprep.subr.mxu0 0.0
    %779 = vmatpush1.msra.mxu0 %v747
    %780 = vmatprep.subr.mxu0 0.0
    %781 = vmatpush1.msra.mxu0 %v746
    %782 = vmatprep.subr.mxu0 0.0
    %783 = vmatpush1.msra.mxu0 %v745
    %784 = vmatprep.subr.mxu0 0.0
    %785 = vmatpush1.msra.mxu0 %v744
    %786 = vmatprep.subr.mxu0 0.0
    %787 = vmatpush1.msra.mxu0 %v743
    %788 = vmatprep.subr.mxu0 0.0
    %789 = vmatpush1.msra.mxu0 %v742
    %790 = vmatprep.subr.mxu0 0.0
    %791 = vmatpush1.msra.mxu0 %v741
    %792 = vmatprep.subr.mxu0 0.0
    %793 = vmatpush1.msra.mxu0 %v740
    %794 = vmatprep.subr.mxu0 0.0
    %795 = vmatpush2.msra.mxu0 0.0
    %796 = vmatprep.subr.mxu0 0.0
    %797 = vmatpush2.msra.mxu0 0.0
    %798 = vmatprep.subr.mxu0 0.0
    %799 = vmatpush2.msra.mxu0 0.0
    %800 = vmatprep.subr.mxu0 0.0
    %801 = vmatpush2.msra.mxu0 0.0
    %802 = vmatprep.subr.mxu0 0.0
    %803 = vmatpush2.msra.mxu0 0.0
    %804 = vmatprep.subr.mxu0 0.0
    %805 = vmatpush2.msra.mxu0 0.0
    %806 = vmatprep.subr.mxu0 0.0
    %807 = vmatpush2.msra.mxu0 0.0
    %808 = vmatprep.subr.mxu0 0.0
    %809 = vmatpush2.msra.mxu0 0.0
    %810 = vmatprep.subr.mxu0 0.0
    %811 = vmatpush2.msra.mxu0 0.0
    %812 = vmatprep.subr.mxu0 0.0
    %813 = vmatpush2.msra.mxu0 0.0
    %814 = vmatprep.subr.mxu0 0.0
    %815 = vmatpush2.msra.mxu0 0.0
    %816 = vmatprep.subr.mxu0 0.0
    %817 = vmatpush2.msra.mxu0 0.0
    %818 = vmatprep.subr.mxu0 0.0
    %819 = vmatpush2.msra.mxu0 0.0
    %820 = vmatprep.subr.mxu0 0.0
    %821 = vmatpush2.msra.mxu0 0.0
    %822 = vmatprep.subr.mxu0 0.0
    %823 = vmatpush2.msra.mxu0 0.0
    %824 = vmatprep.subr.mxu0 0.0
    %825 = vmatpush2.msra.mxu0 0.0
    %826 = vmatprep.mubr.f32.mxu0 0.0
    %827 = vmatmul.mubr.f32.gmra.mxu0 %v757
    %v828 = vpop.f32.mrf.mxu0
    %v829 = vadd.f32 %v753, %v828
    %v830 = vpop.f32.mrf.mxu0
    %831 = vmatprep.mubr.f32.mxu0 0.0
    %832 = vmatmul.mubr.f32.gmra.mxu0 %v760
    %v833 = vpop.f32.mrf.mxu0
    %v834 = vadd.f32 %v753, %v833
    %v835 = vpop.f32.mrf.mxu0
    %836 = vdwg.mxu0
    %v837 = vld [vmem:[%s8 + $0x8] sm:$0x1]
    %v838 = vld [vmem:[%s8 + $0x9] sm:$0x1]
    %v839 = vsel %vm64, %v829, 0.0
    %840 = vadd.xlane.f32.xlu0 %v839
    %v841 = vpop.xlane.xlu0 %840
    %v842 = vsel %vm64, %v834, 0.0
    %843 = vadd.xlane.f32.xlu0 %v842
    %v844 = vpop.xlane.xlu0 %843
    %v845 = vmul.f32 %v841, %v607
    %v846 = vmul.f32 %v844, %v607
    %v847 = vsub.f32 %v829, %v845
    %v848 = vsub.f32 %v834, %v846
    %v849 = vmul.f32 %v847, %v847
    %v850 = vmul.f32 %v848, %v848
    %v851 = vsel %vm64, %v849, 0.0
    %852 = vadd.xlane.f32.xlu0 %v851
    %v853 = vpop.xlane.xlu0 %852
    %v854 = vsel %vm64, %v850, 0.0
    %855 = vadd.xlane.f32.xlu0 %v854
    %v856 = vpop.xlane.xlu0 %855
    %v857 = vmul.f32 %v853, %v607
    %v858 = vmul.f32 %v856, %v607
    %v859 = vadd.f32 %v857, 1e-05
    %v860 = vadd.f32 %v858, 1e-05
    %v861 = vrsqrt.pop %v859
    %v862 = vrsqrt.pop %v860
    %v863 = vmul.f32 %v847, %v861
    %v864 = vmul.f32 %v848, %v862
    %v866 = vlaneseq
    %v867 = vshrl.u32 %v866, 7
    %v868 = vsub.s32 0, %v867
    %v869 = vrot.slane %v837, %v868
    %v871 = vmul.f32 %v863, %v869
    %v872 = vmul.f32 %v864, %v869
    %v874 = vlaneseq
    %v875 = vshrl.u32 %v874, 7
    %v876 = vsub.s32 0, %v875
    %v877 = vrot.slane %v838, %v876
    %v879 = vadd.f32 %v871, %v877
    %v880 = vadd.f32 %v872, %v877
    %v881 = vadd.f32 %v33, %v879
    %v882 = vadd.f32 %v34, %v880
    %883 = vst.msk [vmem:[#allocation2] sm:$0xff] %vm64, %v881
    %884 = vst.msk [vmem:[#allocation2 + $0x8] sm:$0xff] %vm64, %v882
    // Predicated region
    $region38: #{tpu_custom_call.1} parent=1 // pred_check
      _
    $region39: #{tpu_custom_call.1} parent=1 // pred_check_branch
      %886 = sbr.rel (0) target = $region41
    $region40: #{tpu_custom_call.1} parent=1 // pred_region
      %s888 = ssub.s32 256, 256
      %889 = vsyncadd [#allocation3], %s888
      %s890 = sshll.u32 [#allocation2], 4
      %s891 = int_to_ptr.vmem [resolvable:$true] %s890
      %896 = dma.vmem_to_hbm [thread:$0]  %s891, 256, %s9, [#allocation3], 128, 128, 8
    $region41: #{tpu_custom_call.1} parent=1 // pred_fallthru
      _
    // Predicated region
    $region42: #{tpu_custom_call.1} parent=1 // pred_check
      _
    $region43: #{tpu_custom_call.1} parent=1 // pred_check_branch
      %898 = sbr.rel (0) target = $region45
    $region44: #{tpu_custom_call.1} parent=1 // pred_region
      %899 = dma.done [#allocation3], 256
    $region45: #{tpu_custom_call.1} parent=1 // pred_fallthru
      _
    %900 = vsyncpa [#allocation3], 1

</llo_original>
